<compile_context>
chip_gen: v7x
topology: tpu7x:2x2x1
jax: 0.10.0
libtpu: 0.0.40
codegen_flags: <defaults>
</compile_context>

<pallas_src>
import jax
import jax.numpy as jnp
import numpy as np
from jax.experimental import pallas as pl
from jax.experimental.pallas import tpu as pltpu


def _round_up(x, m):
    return (x + m - 1) // m * m


def _pick_k_tile(k_pad, tk_cap):
    """Largest K tile <= tk_cap that divides k_pad exactly (full K if it fits)."""
    if k_pad <= tk_cap:
        return k_pad
    best = None
    for t in range(128, tk_cap + 1, 128):
        if k_pad % t == 0:
            best = t
    return best if best is not None else k_pad  # fallback: single full-K tile


# ------------------------------------------------------------------ kernels ---
def _make_linear_kernel(has_bias, use_acc_scratch):
    """Build a (tm, tk) x (tk, tn) tile-matmul kernel.

    Refs (in order): x, w, [bias], out, [acc scratch].
    If use_acc_scratch is False the f32 output block itself is the accumulator.
    """

    def kernel(*refs):
        if has_bias:
            x_ref, w_ref, b_ref, o_ref = refs[0], refs[1], refs[2], refs[3]
            rest = refs[4:]
        else:
            x_ref, w_ref, o_ref = refs[0], refs[1], refs[2]
            b_ref = None
            rest = refs[3:]
        acc_ref = rest[0] if use_acc_scratch else o_ref

        kidx = pl.program_id(2)

        @pl.when(kidx == 0)
        def _init():
            acc_ref[...] = jnp.zeros_like(acc_ref)

        acc_ref[...] += jnp.dot(
            x_ref[...], w_ref[...], preferred_element_type=jnp.float32
        )

        @pl.when(kidx == pl.num_programs(2) - 1)
        def _finalize():
            if use_acc_scratch:
                res = acc_ref[...]
                if has_bias:
                    res = res + b_ref[...]
                o_ref[...] = res.astype(o_ref.dtype)
            elif has_bias:
                o_ref[...] = o_ref[...] + b_ref[...]

    return kernel


# --------------------------------------------------------------- weight prep ---
def prepare_linear_params(weight, bias=None, *, compute_dtype=jnp.bfloat16, tk=1024):
    """One-time layout prep: weight (out,in) -> (K[, padded], N) in compute dtype;
    bias -> (1, N) float32. Do this once per parameter set, not per call."""
    out_features, in_features = weight.shape
    w_kn = jnp.asarray(weight).astype(compute_dtype).T  # (K, N)
    if in_features > tk and in_features % 128 != 0:
        k_pad = _round_up(in_features, 128)
        w_kn = jnp.pad(w_kn, ((0, k_pad - in_features), (0, 0)))
    b_row = None
    if bias is not None:
        b_row = jnp.asarray(bias).astype(jnp.float32).reshape(1, out_features)
    return w_kn, b_row


# ----------------------------------------------------------------- wrapper ---
def linear_pallas(x, w_kn, b_row=None, *, tm=512, tn=512, tk=1024,
                  compute_dtype=jnp.bfloat16):
    """x: (..., K); w_kn: prepared (K_pad, N); b_row: (1, N) f32 or None.

    Returns (..., N) in x.dtype. MXU work in `compute_dtype`, accumulation in f32.
    """
    orig_shape = x.shape
    out_dtype = x.dtype
    k = orig_shape[-1]
    k_pad, n = w_kn.shape

    x2d = x.reshape(-1, k)
    m = x2d.shape[0]

    if x2d.dtype != compute_dtype:
        x2d = x2d.astype(compute_dtype)
    if w_kn.dtype != compute_dtype:
        w_kn = w_kn.astype(compute_dtype)
    if k_pad != k:  # only K ever needs real zero padding for correctness
        x2d = jnp.pad(x2d, ((0, 0), (0, k_pad - k)))

    itemsize = np.dtype(compute_dtype).itemsize
    sub_min = max(8, 32 // itemsize)          # 8 (f32), 16 (bf16), 32 (int8/fp8)
    tm = min(tm, _round_up(m, sub_min))
    tn = min(tn, _round_up(n, 128))
    tk = _pick_k_tile(k_pad, tk)

    gm, gn = pl.cdiv(m, tm), pl.cdiv(n, tn)
    # Megacore (v7x): make sure both TensorCores get at least one M*N block.
    if gm == 1 and gn == 1 and tn > 128:
        tn = _round_up(pl.cdiv(tn, 2), 128)
        gn = pl.cdiv(n, tn)
    gk = k_pad // tk
    grid = (gm, gn, gk)

    has_bias = b_row is not None
    use_acc_scratch = out_dtype != jnp.float32   # f32 output accumulates in place

    in_specs = [
        pl.BlockSpec((tm, tk), lambda i, j, kk: (i, kk)),
        pl.BlockSpec((tk, tn), lambda i, j, kk: (kk, j)),
    ]
    args = [x2d, w_kn]
    if has_bias:
        in_specs.append(pl.BlockSpec((1, tn), lambda i, j, kk: (0, j)))
        args.append(b_row)

    scratch = [pltpu.VMEM((tm, tn), jnp.float32)] if use_acc_scratch else []

    cost = pl.CostEstimate(
        flops=2 * m * n * k_pad,
        transcendentals=0,
        bytes_accessed=(m * k_pad + k_pad * n) * itemsize
        + m * n * np.dtype(out_dtype).itemsize,
    )

    out = pl.pallas_call(
        _make_linear_kernel(has_bias, use_acc_scratch),
        out_shape=jax.ShapeDtypeStruct((m, n), out_dtype),
        grid_spec=pltpu.PrefetchScalarGridSpec(
            num_scalar_prefetch=0,
            grid=grid,
            in_specs=in_specs,
            out_specs=pl.BlockSpec((tm, tn), lambda i, j, kk: (i, j)),
            scratch_shapes=scratch,
        ),
        compiler_params=pltpu.CompilerParams(
            dimension_semantics=("parallel", "parallel", "arbitrary")
        ),
        cost_estimate=cost,
    )(*args)

    return out.reshape(*orig_shape[:-1], n)


def linear_forward(x, weight, bias=None, **kwargs):
    """Convenience one-shot path (does weight prep per call; prefer prepare+apply)."""
    w_kn, b_row = prepare_linear_params(weight, bias,
                                        compute_dtype=kwargs.get("compute_dtype",
                                                                 jnp.bfloat16))
    return linear_pallas(x, w_kn, b_row, **kwargs)


# ------------------------------------------------------- parameter creation ---
def weight_init(key, shape, mode, fan_in, fan_out):
    if mode == "xavier_uniform":
        return np.sqrt(6 / (fan_in + fan_out)) * jax.random.uniform(
            key, shape, jnp.float32, -1.0, 1.0)
    if mode == "xavier_normal":
        return np.sqrt(2 / (fan_in + fan_out)) * jax.random.normal(key, shape, jnp.float32)
    if mode == "kaiming_uniform":
        return np.sqrt(3 / fan_in) * jax.random.uniform(key, shape, jnp.float32, -1.0, 1.0)
    if mode == "kaiming_normal":
        return np.sqrt(1 / fan_in) * jax.random.normal(key, shape, jnp.float32)
    raise ValueError(f'Invalid init mode "{mode}"')


def init_linear_params(key, in_features, out_features, bias=True,
                       init_mode="kaiming_normal", init_weight=1.0, init_bias=0.0):
    kw, kb = jax.random.split(key)
    w = weight_init(kw, (out_features, in_features), init_mode,
                    in_features, out_features) * init_weight
    b = (weight_init(kb, (out_features,), init_mode, in_features, out_features)
         * init_bias) if bias else None
    return w, b


# ----------------------------------------------------------------- __main__ ---
if __name__ == "__main__":
    key = jax.random.PRNGKey(0)
    k_x, k_p, k_x2, k_p2, k_x3, k_p3 = jax.random.split(key, 6)

    # --- test 1: module-sized small shapes, f32 activations (in-place f32 acc) ---
    batch, seq, in_f, out_f = 2, 8, 32, 48
    x = jax.random.normal(k_x, (batch, seq, in_f), jnp.float32)
    weight, bias = init_linear_params(k_p, in_f, out_f, init_bias=1.0)
    w_kn, b_row = prepare_linear_params(weight, bias)           # one-time prep
    y = jax.block_until_ready(linear_pallas(x, w_kn, b_row))
    y_ref = x @ weight.T + bias
    np.testing.assert_allclose(np.asarray(y), np.asarray(y_ref), rtol=3e-2, atol=3e-2)
    assert y.shape == (batch, seq, out_f) and y.dtype == jnp.float32

    # --- test 2: multi-tile M/N/K accumulation with a partial M edge block --------
    b2, s2, k2, n2 = 2, 24, 256, 256
    x2 = jax.random.normal(k_x2, (b2, s2, k2), jnp.float32)
    w2, bia2 = init_linear_params(k_p2, k2, n2, init_bias=1.0)
    w2_kn, b2_row = prepare_linear_params(w2, bia2)
    y2 = jax.block_until_ready(
        linear_pallas(x2, w2_kn, b2_row, tm=32, tn=128, tk=128))  # grid = (2, 2, 2)
    y2_ref = x2 @ w2.T + bia2
    np.testing.assert_allclose(np.asarray(y2), np.asarray(y2_ref), rtol=3e-2, atol=3e-2)
    assert y2.shape == (b2, s2, n2)

    # --- test 3: bf16 activations, no bias (scratch-accumulator path) ------------
    x3 = jax.random.normal(k_x3, (4, 40, 64), jnp.float32).astype(jnp.bfloat16)
    w3, _ = init_linear_params(k_p3, 64, 128, bias=False)
    w3_kn, _ = prepare_linear_params(w3, None)
    y3 = jax.block_until_ready(linear_pallas(x3, w3_kn, None))
    y3_ref = x3.astype(jnp.float32) @ w3.T
    np.testing.assert_allclose(np.asarray(y3, dtype=np.float32),
                               np.asarray(y3_ref), rtol=5e-2, atol=5e-2)
    assert y3.dtype == jnp.bfloat16 and y3.shape == (4, 40, 128)

    print("KERNEL_OK")
</pallas_src>

<mosaic_0001>
module attributes {stable_mosaic.version = 11 : i64} {
  func.func @kernel(%arg0: i32, %arg1: i32, %arg2: i32, %arg3: memref<16x32xbf16, #tpu.memory_space<vmem>>, %arg4: memref<32x128xbf16, #tpu.memory_space<vmem>>, %arg5: memref<1x128xf32, #tpu.memory_space<vmem>>, %arg6: memref<16x128xf32, #tpu.memory_space<vmem>>) attributes {dimension_semantics = [#tpu.dimension_semantics<parallel>, #tpu.dimension_semantics<parallel>, #tpu.dimension_semantics<arbitrary>], iteration_bounds = array<i64: 1, 1, 1>, scalar_prefetch = 0 : i64, scratch_operands = 0 : i64, tpu.core_type = #tpu.core_type<tc>, window_params = [{transform_indices = @transform_0, window_bounds = array<i64: 16, 32>}, {transform_indices = @transform_1, window_bounds = array<i64: 32, 128>}, {transform_indices = @transform_2, window_bounds = array<i64: 1, 128>}, {transform_indices = @transform_3, window_bounds = array<i64: 16, 128>}]} {
    %c0_i32 = arith.constant 0 : i32
    %0 = arith.cmpi eq, %arg2, %c0_i32 : i32
    %1 = arith.extui %0 : i1 to i32
    %c0_i32_0 = arith.constant 0 : i32
    %2 = arith.cmpi ne, %1, %c0_i32_0 : i32
    scf.if %2 {
      %cst_10 = arith.constant 0.000000e+00 : f32
      %12 = vector.broadcast %cst_10 : f32 to vector<16x128xf32>
      %c0_11 = arith.constant 0 : index
      %c0_12 = arith.constant 0 : index
      %13 = vector.load %arg6[%c0_11, %c0_12] : memref<16x128xf32, #tpu.memory_space<vmem>>, vector<16x128xf32>
      tpu.vector_store %arg6[%c0_11, %c0_12], %12 {strides = array<i32>} : memref<16x128xf32, #tpu.memory_space<vmem>>, vector<16x128xf32>,
    } else {
    }
    %c0 = arith.constant 0 : index
    %c0_1 = arith.constant 0 : index
    %3 = vector.load %arg6[%c0, %c0_1] : memref<16x128xf32, #tpu.memory_space<vmem>>, vector<16x128xf32>
    %c0_2 = arith.constant 0 : index
    %c0_3 = arith.constant 0 : index
    %4 = vector.load %arg3[%c0_2, %c0_3] : memref<16x32xbf16, #tpu.memory_space<vmem>>, vector<16x32xbf16>
    %c0_4 = arith.constant 0 : index
    %c0_5 = arith.constant 0 : index
    %5 = vector.load %arg4[%c0_4, %c0_5] : memref<32x128xbf16, #tpu.memory_space<vmem>>, vector<32x128xbf16>
    %cst = arith.constant dense<0.000000e+00> : vector<16x128xf32>
    %6 = tpu.matmul %4, %5, %cst {dimension_numbers = #tpu.dot_dimension_numbers<[1], [0], [0], [1], [0, 0, 1, 1], [], []>} : vector<16x32xbf16>, vector<32x128xbf16>, vector<16x128xf32> -> vector<16x128xf32>
    %7 = arith.addf %3, %6 : vector<16x128xf32>
    %c0_6 = arith.constant 0 : index
    %c0_7 = arith.constant 0 : index
    %8 = vector.load %arg6[%c0_6, %c0_7] : memref<16x128xf32, #tpu.memory_space<vmem>>, vector<16x128xf32>
    tpu.vector_store %arg6[%c0_6, %c0_7], %7 {strides = array<i32>} : memref<16x128xf32, #tpu.memory_space<vmem>>, vector<16x128xf32>,
    %c0_i32_8 = arith.constant 0 : i32
    %9 = arith.cmpi eq, %arg2, %c0_i32_8 : i32
    %10 = arith.extui %9 : i1 to i32
    %c0_i32_9 = arith.constant 0 : i32
    %11 = arith.cmpi ne, %10, %c0_i32_9 : i32
    scf.if %11 {
      %c0_10 = arith.constant 0 : index
      %c0_11 = arith.constant 0 : index
      %12 = vector.load %arg6[%c0_10, %c0_11] : memref<16x128xf32, #tpu.memory_space<vmem>>, vector<16x128xf32>
      %c0_12 = arith.constant 0 : index
      %c0_13 = arith.constant 0 : index
      %13 = vector.load %arg5[%c0_12, %c0_13] : memref<1x128xf32, #tpu.memory_space<vmem>>, vector<1x128xf32>
      %14 = vector.broadcast %13 : vector<1x128xf32> to vector<16x128xf32>
      %15 = arith.addf %12, %14 : vector<16x128xf32>
      %c0_14 = arith.constant 0 : index
      %c0_15 = arith.constant 0 : index
      %16 = vector.load %arg6[%c0_14, %c0_15] : memref<16x128xf32, #tpu.memory_space<vmem>>, vector<16x128xf32>
      tpu.vector_store %arg6[%c0_14, %c0_15], %15 {strides = array<i32>} : memref<16x128xf32, #tpu.memory_space<vmem>>, vector<16x128xf32>,
    } else {
    }
    return
  }
  func.func @transform_0(%arg0: i32, %arg1: i32, %arg2: i32) -> (i32, i32) {
    %c0_i32 = arith.constant 0 : i32
    return %arg0, %arg2 : i32, i32
  }
  func.func @transform_1(%arg0: i32, %arg1: i32, %arg2: i32) -> (i32, i32) {
    %c0_i32 = arith.constant 0 : i32
    return %arg2, %arg1 : i32, i32
  }
  func.func @transform_2(%arg0: i32, %arg1: i32, %arg2: i32) -> (i32, i32) {
    %c0_i32 = arith.constant 0 : i32
    %c0_i32_0 = arith.constant 0 : i32
    return %c0_i32, %arg1 : i32, i32
  }
  func.func @transform_3(%arg0: i32, %arg1: i32, %arg2: i32) -> (i32, i32) {
    %c0_i32 = arith.constant 0 : i32
    return %arg0, %arg1 : i32, i32
  }
}

</mosaic_0001>

<llo_original>
// kernel: tpu_custom_call.1
$region0: #{tpu_custom_call.1}
  #allocation0 [shape = 'u32[]', space=smem, size = 0x4, offset = 0x4, fixed_abs, tag = 'smem constant byte address 0x4 - core index']
  #allocation1 [shape = 'u32[144,128]{1,0:T(1,128)}', space=vmem, size = 0x12000, scoped, tag = 'internal scratch']
  %s0 = inlined_call_operand.hbm [shape: bf16[16,32], index: 0, kind: input, shape index: {}]
  %s1 = inlined_call_operand.hbm [shape: bf16[32,48], index: 1, kind: input, shape index: {}]
  %s2 = inlined_call_operand.vmem [shape: f32[1,48], index: 2, kind: input, shape index: {}]
  %s3 = inlined_call_operand.hbm [shape: f32[16,48], index: 3, kind: output, shape index: {}]
  %s4 = sld [smem:[#allocation0]]
  $region38: #{tpu_custom_call.1} parent=0
    _
  %s6 = ssub.s32 1, %s4
  %s7 = scalar_select 0, %s6, %s4
  $region1: #{tpu_custom_call.1} parent=0
    #allocation2 [shape = 'u8[4096]{0}', space=vmem, size = 0x1000, scoped, tag = 'input window, operand 0, single buffered']
    #allocation3 [shape = 's32[1]{0}', space=sflag, size = 0x4, scoped, tag = 'scoped memory for tpu_custom_call.1']
    #allocation4 [shape = 's32[1]{0}', space=sflag, size = 0x4, scoped, tag = 'scoped memory for tpu_custom_call.1']
    #allocation5 [shape = 'u8[8192]{0}', space=vmem, size = 0x2000, scoped, tag = 'input window, operand 1, single buffered']
    #allocation6 [shape = 's32[1]{0}', space=sflag, size = 0x4, scoped, tag = 'scoped memory for tpu_custom_call.1']
    #allocation7 [shape = 'u8[8192]{0}', space=vmem, size = 0x2000, scoped, tag = 'output window, operand 0, single buffered']
    %8 = vsyncpa [#allocation3], 0
    %9 = vsyncpa [#allocation6], 0
    %10 = vsyncpa [#allocation4], 0
    // Predicated region
    $region2: #{tpu_custom_call.1} parent=1 // pred_check
      _
    $region3: #{tpu_custom_call.1} parent=1 // pred_check_branch
      %12 = sbr.rel (0) target = $region5
    $region4: #{tpu_custom_call.1} parent=1 // pred_region
      %s14 = ssub.s32 128, 128
      %15 = vsyncadd [#allocation3], %s14
      %s16 = sshll.u32 [#allocation2], 4
      %s17 = int_to_ptr.vmem [resolvable:$true] %s16
      %22 = dma.hbm_to_vmem [thread:$0]  %s0, 128, %s17, [#allocation3], 64, 64, 4
    $region5: #{tpu_custom_call.1} parent=1 // pred_fallthru
      _
    // Predicated region
    $region6: #{tpu_custom_call.1} parent=1 // pred_check
      _
    $region7: #{tpu_custom_call.1} parent=1 // pred_check_branch
      %24 = sbr.rel (0) target = $region9
    $region8: #{tpu_custom_call.1} parent=1 // pred_region
      %s26 = ssub.s32 256, 256
      %27 = vsyncadd [#allocation6], %s26
      %s28 = sshll.u32 [#allocation5], 4
      %s29 = int_to_ptr.vmem [resolvable:$true] %s28
      %34 = dma.hbm_to_vmem [thread:$0]  %s1, 256, %s29, [#allocation6], 64, 64, 4
    $region9: #{tpu_custom_call.1} parent=1 // pred_fallthru
      _
    // Predicated region
    $region10: #{tpu_custom_call.1} parent=1 // pred_check
      _
    $region11: #{tpu_custom_call.1} parent=1 // pred_check_branch
      %36 = sbr.rel (0) target = $region13
    $region12: #{tpu_custom_call.1} parent=1 // pred_region
      _
    $region13: #{tpu_custom_call.1} parent=1 // pred_fallthru
      _
    // Predicated region
    $region14: #{tpu_custom_call.1} parent=1 // pred_check
      _
    $region15: #{tpu_custom_call.1} parent=1 // pred_check_branch
      %38 = sbr.rel (0) target = $region17
    $region16: #{tpu_custom_call.1} parent=1 // pred_region
      %39 = dma.done [#allocation3], 128
    $region17: #{tpu_custom_call.1} parent=1 // pred_fallthru
      _
    // Predicated region
    $region18: #{tpu_custom_call.1} parent=1 // pred_check
      _
    $region19: #{tpu_custom_call.1} parent=1 // pred_check_branch
      %41 = sbr.rel (0) target = $region21
    $region20: #{tpu_custom_call.1} parent=1 // pred_region
      %42 = dma.done [#allocation6], 256
    $region21: #{tpu_custom_call.1} parent=1 // pred_fallthru
      _
    %p44 = scmp.eq.s32.totalorder 0, 0
    // Predicated region
    $region22: #{tpu_custom_call.1} parent=1 // pred_check
      %p45 = pneg %p44
    $region23: #{tpu_custom_call.1} parent=1 // pred_check_branch
      %47 = sbr.rel (%p45) target = $region25
    $region24: #{tpu_custom_call.1} parent=1 // pred_region
      %48 = vst [vmem:[#allocation7] sm:$0xff] 0.0
      %49 = vst [vmem:[#allocation7 + $0x8] sm:$0xff] 0.0
    $region25: #{tpu_custom_call.1} parent=1 // pred_fallthru
      _
    %v50 = vld [vmem:[#allocation7] sm:$0xff]
    %v51 = vld [vmem:[#allocation7 + $0x8] sm:$0xff]
    %v52 = vld [vmem:[#allocation2] sm:$0xf]
    %v53 = vld [vmem:[#allocation2 + $0x4] sm:$0xf]
    %v54 = vld [vmem:[#allocation5] sm:$0xf]
    %v55 = vld [vmem:[#allocation5 + $0x4] sm:$0xf]
    %v56 = vld [vmem:[#allocation5 + $0x8] sm:$0xf]
    %v57 = vld [vmem:[#allocation5 + $0xc] sm:$0xf]
    %v60 = vunpack.c.l.b16 %v52
    %v61 = vunpack.c.l.b16 %v53
    %v62 = vpack.c.b16 %v61, %v60
    %v67 = vunpack.c.l.b16 %v54
    %v68 = vunpack.c.l.b16 %v55
    %v69 = vunpack.c.l.b16 %v56
    %v70 = vunpack.c.l.b16 %v57
    %v71 = vpack.c.b16 %v68, %v67
    %v72 = vpack.c.b16 %v70, %v69
    %vm75 = vcmask 261120
    %v77 = vsel %vm75, %v62, 0
    %79 = vmatprep.subr.bf16.mxu0 0
    %80 = vmatpush1.bf16.msra.mxu0 %v71
    %81 = vmatprep.subr.bf16.mxu0 0
    %82 = vmatpush1.bf16.msra.mxu0 %v72
    %83 = vmatprep.subr.bf16.mxu0 0
    %84 = vmatpush1.bf16.msra.mxu0 0
    %85 = vmatprep.subr.bf16.mxu0 0
    %86 = vmatpush1.bf16.msra.mxu0 0
    %87 = vmatprep.subr.bf16.mxu0 0
    %88 = vmatpush1.bf16.msra.mxu0 0
    %89 = vmatprep.subr.bf16.mxu0 0
    %90 = vmatpush1.bf16.msra.mxu0 0
    %91 = vmatprep.subr.bf16.mxu0 0
    %92 = vmatpush1.bf16.msra.mxu0 0
    %93 = vmatprep.subr.bf16.mxu0 0
    %94 = vmatpush1.bf16.msra.mxu0 0
    %95 = vmatprep.subr.bf16.mxu0 0
    %96 = vmatpush1.bf16.msra.mxu0 0
    %97 = vmatprep.subr.bf16.mxu0 0
    %98 = vmatpush1.bf16.msra.mxu0 0
    %99 = vmatprep.subr.bf16.mxu0 0
    %100 = vmatpush1.bf16.msra.mxu0 0
    %101 = vmatprep.subr.bf16.mxu0 0
    %102 = vmatpush1.bf16.msra.mxu0 0
    %103 = vmatprep.subr.bf16.mxu0 0
    %104 = vmatpush1.bf16.msra.mxu0 0
    %105 = vmatprep.subr.bf16.mxu0 0
    %106 = vmatpush1.bf16.msra.mxu0 0
    %107 = vmatprep.subr.bf16.mxu0 0
    %108 = vmatpush1.bf16.msra.mxu0 0
    %109 = vmatprep.subr.bf16.mxu0 0
    %110 = vmatpush1.bf16.msra.mxu0 0
    %111 = vmatprep.mubr.bf16.mxu0 0
    %112 = vmatmul.mubr.bf16.gmra.mrb[0].mxu0 %v77
    %v113 = vpop.f32.mrb[0].mxu0
    %v114 = vadd.f32 0.0, %v113
    %v115 = vpop.f32.mrb[0].mxu0
    %v116 = vpop.f32.mrb[0].mxu0
    %v117 = vadd.f32 0.0, %v116
    %v118 = vpop.f32.mrb[0].mxu0
    %119 = vdwg.mxu0
    %v120 = vadd.f32 %v50, %v114
    %v121 = vadd.f32 %v51, %v117
    %122 = vst [vmem:[#allocation7] sm:$0xff] %v120
    %123 = vst [vmem:[#allocation7 + $0x8] sm:$0xff] %v121
    // Predicated region
    $region26: #{tpu_custom_call.1} parent=1 // pred_check
      %p124 = pneg %p44
    $region27: #{tpu_custom_call.1} parent=1 // pred_check_branch
      %126 = sbr.rel (%p124) target = $region29
    $region28: #{tpu_custom_call.1} parent=1 // pred_region
      %v127 = vld [vmem:[#allocation7] sm:$0xff]
      %v128 = vld [vmem:[#allocation7 + $0x8] sm:$0xff]
      %v129 = vld [vmem:[%s2] sm:$0x1]
      %v131 = vlaneseq
      %v132 = vshrl.u32 %v131, 7
      %v133 = vsub.s32 0, %v132
      %v134 = vrot.slane %v129, %v133
      %v136 = vadd.f32 %v127, %v134
      %v137 = vadd.f32 %v128, %v134
      %138 = vst [vmem:[#allocation7] sm:$0xff] %v136
      %139 = vst [vmem:[#allocation7 + $0x8] sm:$0xff] %v137
    $region29: #{tpu_custom_call.1} parent=1 // pred_fallthru
      _
    // Predicated region
    $region30: #{tpu_custom_call.1} parent=1 // pred_check
      _
    $region31: #{tpu_custom_call.1} parent=1 // pred_check_branch
      %141 = sbr.rel (0) target = $region33
    $region32: #{tpu_custom_call.1} parent=1 // pred_region
      %s143 = ssub.s32 256, 256
      %144 = vsyncadd [#allocation4], %s143
      %s145 = sshll.u32 [#allocation7], 4
      %s146 = int_to_ptr.vmem [resolvable:$true] %s145
      %151 = dma.vmem_to_hbm [thread:$0]  %s146, 256, %s3, [#allocation4], 128, 128, 8
    $region33: #{tpu_custom_call.1} parent=1 // pred_fallthru
      _
    // Predicated region
    $region34: #{tpu_custom_call.1} parent=1 // pred_check
      _
    $region35: #{tpu_custom_call.1} parent=1 // pred_check_branch
      %153 = sbr.rel (0) target = $region37
    $region36: #{tpu_custom_call.1} parent=1 // pred_region
      %154 = dma.done [#allocation4], 256
    $region37: #{tpu_custom_call.1} parent=1 // pred_fallthru
      _
    %155 = vsyncpa [#allocation3], 1
    %156 = vsyncpa [#allocation6], 1
    %157 = vsyncpa [#allocation4], 1

</llo_original>
